<compile_context>
chip_gen: v7x
topology: tpu7x:2x2x1
jax: 0.10.0
libtpu: 0.0.40
codegen_flags: <defaults>
</compile_context>

<pallas_src>
import jax
import jax.numpy as jnp
from jax.experimental import pallas as pl
from jax.experimental.pallas import tpu as pltpu


def _decode_loss_kernel(cf_ref, var_ref, tr_ref,
                        wfa_ref, bfa_ref,
                        w1_ref, b1_ref,
                        w2_ref, b2_ref,
                        w3_ref, b3_ref,
                        out_ref):
    # cf_ref  : (Bb, 1, Cf) f32        var_ref/tr_ref : (Bb, S, E) f32
    # out_ref : (Bb, S, O)  out dtype  weights        : compute dtype, biases f32
    Bb, S, E = var_ref.shape
    Cf = cf_ref.shape[-1]
    O = out_ref.shape[-1]
    cdt = w1_ref.dtype                               # MXU operand dtype
    rows = Bb * S

    # feature_align + ReLU, once per batch element: (Bb, Cf) @ (Cf, E), f32 accum.
    cf = cf_ref[...].reshape(Bb, Cf).astype(cdt)
    aligned = jnp.dot(cf, wfa_ref[...],
                      preferred_element_type=jnp.float32) + bfa_ref[...]
    aligned = jnp.maximum(aligned, 0.0)              # (Bb, E) f32

    # fc1 is linear: (aligned + var + tr) @ W1 == (var + tr) @ W1 + aligned @ W1.
    # Compute the per-batch-element part once (avoids the (rows, E) broadcast).
    a1 = jnp.dot(aligned.astype(cdt), w1_ref[...],
                 preferred_element_type=jnp.float32) + b1_ref[...]    # (Bb, 2E) f32

    vt = var_ref[...] + tr_ref[...]                  # (Bb, S, E) f32 VPU add
    h1 = jnp.dot(vt.reshape(rows, E).astype(cdt), w1_ref[...],
                 preferred_element_type=jnp.float32)                  # (rows, 2E) f32
    h1 = h1.reshape(Bb, S, -1) + a1[:, None, :]
    h1 = jnp.maximum(h1, 0.0).reshape(rows, -1)      # ReLU; dropout1 = identity

    # fc2 -> ReLU -> (dropout2: identity)
    h2 = jnp.dot(h1.astype(cdt), w2_ref[...],
                 preferred_element_type=jnp.float32) + b2_ref[...]
    h2 = jnp.maximum(h2, 0.0)                        # (rows, E) f32

    # fc3 (unpadded out-features -> writeback is exactly O lanes)
    y = jnp.dot(h2.astype(cdt), w3_ref[...],
                preferred_element_type=jnp.float32) + b3_ref[...]     # (rows, O) f32

    out_ref[...] = y.reshape(Bb, S, O).astype(out_ref.dtype)


def _pick_batch_block(B, S, rows_per_tile, min_grid_steps):
    """Largest batch-group size Bb; prefer a divisor of B (no padding)."""
    cap = max(1, rows_per_tile // max(S, 1))
    if min_grid_steps > 1:
        cap = min(cap, max(1, B // min_grid_steps))
    cap = min(cap, B)
    best = 1
    for d in range(1, cap + 1):
        if B % d == 0:
            best = d
    if best == B or best * 2 >= cap:
        return best          # divisor close enough to the cap -> no padding
    return cap               # fall back to padded batch


def decode_loss_approximator(code_feature, var_embedding, transform_embedding, params,
                             *, compute_dtype=jnp.bfloat16, out_dtype=jnp.float32,
                             rows_per_tile=2048, min_grid_steps=1):
    """Pallas-fused forward of DecodeLossApproximator (eval mode).

    code_feature        : (B, Cf)
    var_embedding       : (B, S, E)
    transform_embedding : (B, S, E)
    returns             : (B, S, O) out_dtype (float32 by default)
    min_grid_steps=2 splits the grid across both TensorCores on dual-TC chips (v7x).
    """
    B, S, E = var_embedding.shape
    Cf = code_feature.shape[-1]
    wfa, bfa, w1, b1, w2, b2, w3, b3 = params
    O = w3.shape[-1]
    E2 = w1.shape[-1]

    # Weights: pre-cast once to the compute dtype (tiny, VMEM-resident across the grid).
    # Biases stay f32 and are added after the f32-accumulated matmuls.
    wfa_c = wfa.astype(compute_dtype)
    w1_c = w1.astype(compute_dtype)
    w2_c = w2.astype(compute_dtype)
    w3_c = w3.astype(compute_dtype)
    bfa_f = bfa.astype(jnp.float32)
    b1_f = b1.astype(jnp.float32)
    b2_f = b2.astype(jnp.float32)
    b3_f = b3.astype(jnp.float32)

    # Streaming inputs stay in their native dtype (f32); the kernel casts internally.
    cf3 = code_feature.reshape(B, 1, Cf)
    var = var_embedding
    tr = transform_embedding

    # Batch grouping: large tiles to amortize the ~0.35us per-grid-step overhead,
    # preferring a divisor of B so no padding copy is needed.
    Bb = _pick_batch_block(B, S, rows_per_tile, min_grid_steps)
    grid_b = pl.cdiv(B, Bb)
    Bpad = grid_b * Bb
    if Bpad != B:
        pad = ((0, Bpad - B), (0, 0), (0, 0))
        cf3 = jnp.pad(cf3, pad)
        var = jnp.pad(var, pad)
        tr = jnp.pad(tr, pad)

    # Weights/biases: constant block index every grid step -> fetched once, resident.
    full = lambda shape: pl.BlockSpec(shape, lambda b: (0,) * len(shape))

    out = pl.pallas_call(
        _decode_loss_kernel,
        out_shape=jax.ShapeDtypeStruct((Bpad, S, O), out_dtype),
        grid_spec=pltpu.PrefetchScalarGridSpec(
            num_scalar_prefetch=0,
            grid=(grid_b,),
            in_specs=[
                pl.BlockSpec((Bb, 1, Cf), lambda b: (b, 0, 0)),   # code_feature
                pl.BlockSpec((Bb, S, E), lambda b: (b, 0, 0)),    # var_embedding
                pl.BlockSpec((Bb, S, E), lambda b: (b, 0, 0)),    # transform_embedding
                full((Cf, E)), full((1, E)),                      # feature_align
                full((E, E2)), full((1, E2)),                     # fc1
                full((E2, E)), full((1, E)),                      # fc2
                full((E, O)), full((1, O)),                       # fc3 (unpadded)
            ],
            out_specs=pl.BlockSpec((Bb, S, O), lambda b: (b, 0, 0)),
        ),
        compiler_params=pltpu.CompilerParams(
            dimension_semantics=("parallel",),
            vmem_limit_bytes=32 * 1024 * 1024),
    )(cf3, var, tr, wfa_c, bfa_f, w1_c, b1_f, w2_c, b2_f, w3_c, b3_f)

    return out[:B]


def init_params(key, code_feature_dim, embedding_dim, output_dim):
    """Deterministic PyTorch-like uniform(-1/sqrt(fan_in), 1/sqrt(fan_in)) init.

    Weights stored as (in_features, out_features).
    """
    def linear(k, fin, fout):
        kw, kb = jax.random.split(k)
        bound = 1.0 / jnp.sqrt(fin)
        w = jax.random.uniform(kw, (fin, fout), jnp.float32, -bound, bound)
        b = jax.random.uniform(kb, (1, fout), jnp.float32, -bound, bound)
        return w, b

    k1, k2, k3, k4 = jax.random.split(key, 4)
    wfa, bfa = linear(k1, code_feature_dim, embedding_dim)
    w1, b1 = linear(k2, embedding_dim, embedding_dim * 2)
    w2, b2 = linear(k3, embedding_dim * 2, embedding_dim)
    w3, b3 = linear(k4, embedding_dim, output_dim)
    return (wfa, bfa, w1, b1, w2, b2, w3, b3)


def _reference(code_feature, var_embedding, transform_embedding, params):
    wfa, bfa, w1, b1, w2, b2, w3, b3 = params
    B, S, E = var_embedding.shape
    cf = jnp.maximum(code_feature @ wfa + bfa, 0.0)[:, None, :]
    x = cf + var_embedding + transform_embedding
    x = x.reshape(B * S, -1)
    x = jnp.maximum(x @ w1 + b1, 0.0)
    x = jnp.maximum(x @ w2 + b2, 0.0)
    x = x @ w3 + b3
    return x.reshape(B, S, -1)


if __name__ == "__main__":
    vocab_size = 100            # unused in forward
    transform_capacity = 10     # unused in forward (t_embeddings never called)
    code_feature_dim = 32
    embedding_dim = 32
    output_dim = 16

    key = jax.random.PRNGKey(0)
    kp, kd = jax.random.split(key)
    params = init_params(kp, code_feature_dim, embedding_dim, output_dim)

    def make_inputs(k, B, S):
        k1, k2, k3 = jax.random.split(k, 3)
        cf = jax.random.normal(k1, (B, code_feature_dim), jnp.float32)
        var = jax.random.normal(k2, (B, S, embedding_dim), jnp.float32)
        tr = jax.random.normal(k3, (B, S, embedding_dim), jnp.float32)
        return cf, var, tr

    # Case 1/2: module-consistent shapes, single grid step (no padding, no split).
    # Case 3: B=7 with a tiny rows_per_tile -> multi-step grid + batch-padding path.
    # Case 4: min_grid_steps=2 -> dual-TensorCore (v7x) split path, no padding.
    cases = [
        (2, 8, dict()),
        (5, 8, dict()),
        (7, 8, dict(rows_per_tile=32)),
        (4, 8, dict(min_grid_steps=2)),
    ]
    for idx, (B, S, kw) in enumerate(cases):
        kc = jax.random.fold_in(kd, idx)
        cf, var, tr = make_inputs(kc, B, S)
        ref = _reference(cf, var, tr, params)

        # f32 path: same arithmetic, tiny differences only from the fc1 linearity
        # reordering ((v+t)@W1 + cf_aligned@W1 vs (cf_aligned+v+t)@W1).
        out_f32 = decode_loss_approximator(cf, var, tr, params,
                                           compute_dtype=jnp.float32, **kw)
        out_f32 = jax.block_until_ready(out_f32)
        assert out_f32.shape == (B, S, output_dim), out_f32.shape
        assert jnp.allclose(out_f32, ref, atol=1e-4, rtol=1e-4), \
            "f32 kernel mismatch vs reference"

        # Optimized path: bf16 MXU operands, f32 accumulation (loose tolerance).
        out_bf16 = decode_loss_approximator(cf, var, tr, params, **kw)
        out_bf16 = jax.block_until_ready(out_bf16)
        assert out_bf16.shape == (B, S, output_dim), out_bf16.shape
        assert jnp.allclose(out_bf16, ref, atol=5e-2, rtol=5e-2), \
            "bf16 kernel mismatch vs reference"

    print("KERNEL_OK")
</pallas_src>

<mosaic_0001>
module attributes {stable_mosaic.version = 11 : i64} {
  func.func @_decode_loss_kernel(%arg0: i32, %arg1: memref<2x1x32xf32, #tpu.memory_space<vmem>>, %arg2: memref<2x8x32xf32, #tpu.memory_space<vmem>>, %arg3: memref<2x8x32xf32, #tpu.memory_space<vmem>>, %arg4: memref<32x32xf32, #tpu.memory_space<vmem>>, %arg5: memref<1x32xf32, #tpu.memory_space<vmem>>, %arg6: memref<32x64xf32, #tpu.memory_space<vmem>>, %arg7: memref<1x64xf32, #tpu.memory_space<vmem>>, %arg8: memref<64x32xf32, #tpu.memory_space<vmem>>, %arg9: memref<1x32xf32, #tpu.memory_space<vmem>>, %arg10: memref<32x16xf32, #tpu.memory_space<vmem>>, %arg11: memref<1x16xf32, #tpu.memory_space<vmem>>, %arg12: memref<2x8x16xf32, #tpu.memory_space<vmem>>) attributes {dimension_semantics = [#tpu.dimension_semantics<parallel>], iteration_bounds = array<i64: 1>, scalar_prefetch = 0 : i64, scratch_operands = 0 : i64, tpu.core_type = #tpu.core_type<tc>, window_params = [{transform_indices = @transform_0, window_bounds = array<i64: 2, 1, 32>}, {transform_indices = @transform_1, window_bounds = array<i64: 2, 8, 32>}, {transform_indices = @transform_2, window_bounds = array<i64: 2, 8, 32>}, {pipeline_mode = #tpu.pipeline_mode<synchronous>, transform_indices = @transform_3, window_bounds = array<i64: 32, 32>}, {pipeline_mode = #tpu.pipeline_mode<synchronous>, transform_indices = @transform_4, window_bounds = array<i64: 1, 32>}, {pipeline_mode = #tpu.pipeline_mode<synchronous>, transform_indices = @transform_5, window_bounds = array<i64: 32, 64>}, {pipeline_mode = #tpu.pipeline_mode<synchronous>, transform_indices = @transform_6, window_bounds = array<i64: 1, 64>}, {pipeline_mode = #tpu.pipeline_mode<synchronous>, transform_indices = @transform_7, window_bounds = array<i64: 64, 32>}, {pipeline_mode = #tpu.pipeline_mode<synchronous>, transform_indices = @transform_8, window_bounds = array<i64: 1, 32>}, {pipeline_mode = #tpu.pipeline_mode<synchronous>, transform_indices = @transform_9, window_bounds = array<i64: 32, 16>}, {pipeline_mode = #tpu.pipeline_mode<synchronous>, transform_indices = @transform_10, window_bounds = array<i64: 1, 16>}, {transform_indices = @transform_11, window_bounds = array<i64: 2, 8, 16>}]} {
    %c0 = arith.constant 0 : index
    %c0_0 = arith.constant 0 : index
    %c0_1 = arith.constant 0 : index
    %0 = vector.load %arg1[%c0, %c0_0, %c0_1] : memref<2x1x32xf32, #tpu.memory_space<vmem>>, vector<2x1x32xf32>
    %1 = vector.shape_cast %0 : vector<2x1x32xf32> to vector<2x32xf32>
    %c0_2 = arith.constant 0 : index
    %c0_3 = arith.constant 0 : index
    %2 = vector.load %arg4[%c0_2, %c0_3] : memref<32x32xf32, #tpu.memory_space<vmem>>, vector<32x32xf32>
    %cst = arith.constant dense<0.000000e+00> : vector<2x32xf32>
    %3 = tpu.matmul %1, %2, %cst {dimension_numbers = #tpu.dot_dimension_numbers<[1], [0], [0], [1], [0, 0, 1, 1], [], []>} : vector<2x32xf32>, vector<32x32xf32>, vector<2x32xf32> -> vector<2x32xf32>
    %c0_4 = arith.constant 0 : index
    %c0_5 = arith.constant 0 : index
    %4 = vector.load %arg5[%c0_4, %c0_5] : memref<1x32xf32, #tpu.memory_space<vmem>>, vector<1x32xf32>
    %5 = vector.broadcast %4 : vector<1x32xf32> to vector<2x32xf32>
    %6 = arith.addf %3, %5 : vector<2x32xf32>
    %cst_6 = arith.constant 0.000000e+00 : f32
    %7 = vector.broadcast %cst_6 : f32 to vector<2x32xf32>
    %8 = arith.maximumf %6, %7 : vector<2x32xf32>
    %c0_7 = arith.constant 0 : index
    %c0_8 = arith.constant 0 : index
    %9 = vector.load %arg6[%c0_7, %c0_8] : memref<32x64xf32, #tpu.memory_space<vmem>>, vector<32x64xf32>
    %cst_9 = arith.constant dense<0.000000e+00> : vector<2x64xf32>
    %10 = tpu.matmul %8, %9, %cst_9 {dimension_numbers = #tpu.dot_dimension_numbers<[1], [0], [0], [1], [0, 0, 1, 1], [], []>} : vector<2x32xf32>, vector<32x64xf32>, vector<2x64xf32> -> vector<2x64xf32>
    %c0_10 = arith.constant 0 : index
    %c0_11 = arith.constant 0 : index
    %11 = vector.load %arg7[%c0_10, %c0_11] : memref<1x64xf32, #tpu.memory_space<vmem>>, vector<1x64xf32>
    %12 = vector.broadcast %11 : vector<1x64xf32> to vector<2x64xf32>
    %13 = arith.addf %10, %12 : vector<2x64xf32>
    %c0_12 = arith.constant 0 : index
    %c0_13 = arith.constant 0 : index
    %c0_14 = arith.constant 0 : index
    %14 = vector.load %arg2[%c0_12, %c0_13, %c0_14] : memref<2x8x32xf32, #tpu.memory_space<vmem>>, vector<2x8x32xf32>
    %c0_15 = arith.constant 0 : index
    %c0_16 = arith.constant 0 : index
    %c0_17 = arith.constant 0 : index
    %15 = vector.load %arg3[%c0_15, %c0_16, %c0_17] : memref<2x8x32xf32, #tpu.memory_space<vmem>>, vector<2x8x32xf32>
    %16 = arith.addf %14, %15 : vector<2x8x32xf32>
    %17 = vector.shape_cast %16 : vector<2x8x32xf32> to vector<16x32xf32>
    %c0_18 = arith.constant 0 : index
    %c0_19 = arith.constant 0 : index
    %18 = vector.load %arg6[%c0_18, %c0_19] : memref<32x64xf32, #tpu.memory_space<vmem>>, vector<32x64xf32>
    %cst_20 = arith.constant dense<0.000000e+00> : vector<16x64xf32>
    %19 = tpu.matmul %17, %18, %cst_20 {dimension_numbers = #tpu.dot_dimension_numbers<[1], [0], [0], [1], [0, 0, 1, 1], [], []>} : vector<16x32xf32>, vector<32x64xf32>, vector<16x64xf32> -> vector<16x64xf32>
    %20 = vector.shape_cast %19 : vector<16x64xf32> to vector<2x8x64xf32>
    %21 = vector.shape_cast %13 : vector<2x64xf32> to vector<2x1x64xf32>
    %22 = vector.broadcast %21 : vector<2x1x64xf32> to vector<2x8x64xf32>
    %23 = arith.addf %20, %22 : vector<2x8x64xf32>
    %cst_21 = arith.constant 0.000000e+00 : f32
    %24 = vector.broadcast %cst_21 : f32 to vector<2x8x64xf32>
    %25 = arith.maximumf %23, %24 : vector<2x8x64xf32>
    %26 = vector.shape_cast %25 : vector<2x8x64xf32> to vector<16x64xf32>
    %c0_22 = arith.constant 0 : index
    %c0_23 = arith.constant 0 : index
    %27 = vector.load %arg8[%c0_22, %c0_23] : memref<64x32xf32, #tpu.memory_space<vmem>>, vector<64x32xf32>
    %cst_24 = arith.constant dense<0.000000e+00> : vector<16x32xf32>
    %28 = tpu.matmul %26, %27, %cst_24 {dimension_numbers = #tpu.dot_dimension_numbers<[1], [0], [0], [1], [0, 0, 1, 1], [], []>} : vector<16x64xf32>, vector<64x32xf32>, vector<16x32xf32> -> vector<16x32xf32>
    %c0_25 = arith.constant 0 : index
    %c0_26 = arith.constant 0 : index
    %29 = vector.load %arg9[%c0_25, %c0_26] : memref<1x32xf32, #tpu.memory_space<vmem>>, vector<1x32xf32>
    %30 = vector.broadcast %29 : vector<1x32xf32> to vector<16x32xf32>
    %31 = arith.addf %28, %30 : vector<16x32xf32>
    %cst_27 = arith.constant 0.000000e+00 : f32
    %32 = vector.broadcast %cst_27 : f32 to vector<16x32xf32>
    %33 = arith.maximumf %31, %32 : vector<16x32xf32>
    %c0_28 = arith.constant 0 : index
    %c0_29 = arith.constant 0 : index
    %34 = vector.load %arg10[%c0_28, %c0_29] : memref<32x16xf32, #tpu.memory_space<vmem>>, vector<32x16xf32>
    %cst_30 = arith.constant dense<0.000000e+00> : vector<16x16xf32>
    %35 = tpu.matmul %33, %34, %cst_30 {dimension_numbers = #tpu.dot_dimension_numbers<[1], [0], [0], [1], [0, 0, 1, 1], [], []>} : vector<16x32xf32>, vector<32x16xf32>, vector<16x16xf32> -> vector<16x16xf32>
    %c0_31 = arith.constant 0 : index
    %c0_32 = arith.constant 0 : index
    %36 = vector.load %arg11[%c0_31, %c0_32] : memref<1x16xf32, #tpu.memory_space<vmem>>, vector<1x16xf32>
    %37 = vector.broadcast %36 : vector<1x16xf32> to vector<16x16xf32>
    %38 = arith.addf %35, %37 : vector<16x16xf32>
    %39 = vector.shape_cast %38 : vector<16x16xf32> to vector<2x8x16xf32>
    %c0_33 = arith.constant 0 : index
    %c0_34 = arith.constant 0 : index
    %c0_35 = arith.constant 0 : index
    %40 = vector.load %arg12[%c0_33, %c0_34, %c0_35] : memref<2x8x16xf32, #tpu.memory_space<vmem>>, vector<2x8x16xf32>
    tpu.vector_store %arg12[%c0_33, %c0_34, %c0_35], %39 {strides = array<i32>} : memref<2x8x16xf32, #tpu.memory_space<vmem>>, vector<2x8x16xf32>,
    return
  }
  func.func @transform_0(%arg0: i32) -> (i32, i32, i32) {
    %c0_i32 = arith.constant 0 : i32
    %c0_i32_0 = arith.constant 0 : i32
    %c0_i32_1 = arith.constant 0 : i32
    return %arg0, %c0_i32, %c0_i32_0 : i32, i32, i32
  }
  func.func @transform_1(%arg0: i32) -> (i32, i32, i32) {
    %c0_i32 = arith.constant 0 : i32
    %c0_i32_0 = arith.constant 0 : i32
    %c0_i32_1 = arith.constant 0 : i32
    return %arg0, %c0_i32, %c0_i32_0 : i32, i32, i32
  }
  func.func @transform_2(%arg0: i32) -> (i32, i32, i32) {
    %c0_i32 = arith.constant 0 : i32
    %c0_i32_0 = arith.constant 0 : i32
    %c0_i32_1 = arith.constant 0 : i32
    return %arg0, %c0_i32, %c0_i32_0 : i32, i32, i32
  }
  func.func @transform_3(%arg0: i32) -> (i32, i32) {
    %c0_i32 = arith.constant 0 : i32
    %c0_i32_0 = arith.constant 0 : i32
    %c0_i32_1 = arith.constant 0 : i32
    return %c0_i32, %c0_i32_0 : i32, i32
  }
  func.func @transform_4(%arg0: i32) -> (i32, i32) {
    %c0_i32 = arith.constant 0 : i32
    %c0_i32_0 = arith.constant 0 : i32
    %c0_i32_1 = arith.constant 0 : i32
    return %c0_i32, %c0_i32_0 : i32, i32
  }
  func.func @transform_5(%arg0: i32) -> (i32, i32) {
    %c0_i32 = arith.constant 0 : i32
    %c0_i32_0 = arith.constant 0 : i32
    %c0_i32_1 = arith.constant 0 : i32
    return %c0_i32, %c0_i32_0 : i32, i32
  }
  func.func @transform_6(%arg0: i32) -> (i32, i32) {
    %c0_i32 = arith.constant 0 : i32
    %c0_i32_0 = arith.constant 0 : i32
    %c0_i32_1 = arith.constant 0 : i32
    return %c0_i32, %c0_i32_0 : i32, i32
  }
  func.func @transform_7(%arg0: i32) -> (i32, i32) {
    %c0_i32 = arith.constant 0 : i32
    %c0_i32_0 = arith.constant 0 : i32
    %c0_i32_1 = arith.constant 0 : i32
    return %c0_i32, %c0_i32_0 : i32, i32
  }
  func.func @transform_8(%arg0: i32) -> (i32, i32) {
    %c0_i32 = arith.constant 0 : i32
    %c0_i32_0 = arith.constant 0 : i32
    %c0_i32_1 = arith.constant 0 : i32
    return %c0_i32, %c0_i32_0 : i32, i32
  }
  func.func @transform_9(%arg0: i32) -> (i32, i32) {
    %c0_i32 = arith.constant 0 : i32
    %c0_i32_0 = arith.constant 0 : i32
    %c0_i32_1 = arith.constant 0 : i32
    return %c0_i32, %c0_i32_0 : i32, i32
  }
  func.func @transform_10(%arg0: i32) -> (i32, i32) {
    %c0_i32 = arith.constant 0 : i32
    %c0_i32_0 = arith.constant 0 : i32
    %c0_i32_1 = arith.constant 0 : i32
    return %c0_i32, %c0_i32_0 : i32, i32
  }
  func.func @transform_11(%arg0: i32) -> (i32, i32, i32) {
    %c0_i32 = arith.constant 0 : i32
    %c0_i32_0 = arith.constant 0 : i32
    %c0_i32_1 = arith.constant 0 : i32
    return %arg0, %c0_i32, %c0_i32_0 : i32, i32, i32
  }
}

</mosaic_0001>

<llo_original>
// kernel: tpu_custom_call.1
$region0: #{tpu_custom_call.1}
  #allocation0 [shape = 'u32[]', space=smem, size = 0x4, offset = 0x4, fixed_abs, tag = 'smem constant byte address 0x4 - core index']
  #allocation1 [shape = 'u32[144,128]{1,0:T(1,128)}', space=vmem, size = 0x12000, scoped, tag = 'internal scratch']
  %s0 = inlined_call_operand.vmem [shape: f32[2,1,32], index: 0, kind: input, shape index: {}]
  %s1 = inlined_call_operand.vmem [shape: f32[2,8,32], index: 1, kind: input, shape index: {}]
  %s2 = inlined_call_operand.vmem [shape: f32[2,8,32], index: 2, kind: input, shape index: {}]
  %s3 = inlined_call_operand.vmem [shape: f32[32,32], index: 3, kind: input, shape index: {}]
  %s4 = inlined_call_operand.vmem [shape: f32[1,32], index: 4, kind: input, shape index: {}]
  %s5 = inlined_call_operand.vmem [shape: f32[32,64], index: 5, kind: input, shape index: {}]
  %s6 = inlined_call_operand.vmem [shape: f32[1,64], index: 6, kind: input, shape index: {}]
  %s7 = inlined_call_operand.vmem [shape: f32[64,32], index: 7, kind: input, shape index: {}]
  %s8 = inlined_call_operand.vmem [shape: f32[1,32], index: 8, kind: input, shape index: {}]
  %s9 = inlined_call_operand.vmem [shape: f32[32,16], index: 9, kind: input, shape index: {}]
  %s10 = inlined_call_operand.vmem [shape: f32[1,16], index: 10, kind: input, shape index: {}]
  %s11 = inlined_call_operand.hbm [shape: f32[2,8,16], index: 11, kind: output, shape index: {}]
  %s12 = sld [smem:[#allocation0]]
  $region54: #{tpu_custom_call.1} parent=0
    _
  %s14 = ssub.s32 1, %s12
  %s15 = scalar_select 0, %s14, %s12
  $region1: #{tpu_custom_call.1} parent=0
    #allocation2 [shape = 'u8[8192]{0}', space=vmem, size = 0x2000, scoped, tag = 'output window, operand 0, single buffered']
    #allocation3 [shape = 's32[1]{0}', space=sflag, size = 0x4, scoped, tag = 'scoped memory for tpu_custom_call.1']
    %16 = vsyncpa [#allocation3], 0
    // Predicated region
    $region2: #{tpu_custom_call.1} parent=1 // pred_check
      _
    $region3: #{tpu_custom_call.1} parent=1 // pred_check_branch
      %18 = sbr.rel (0) target = $region5
    $region4: #{tpu_custom_call.1} parent=1 // pred_region
      _
    $region5: #{tpu_custom_call.1} parent=1 // pred_fallthru
      _
    // Predicated region
    $region6: #{tpu_custom_call.1} parent=1 // pred_check
      _
    $region7: #{tpu_custom_call.1} parent=1 // pred_check_branch
      %20 = sbr.rel (0) target = $region9
    $region8: #{tpu_custom_call.1} parent=1 // pred_region
      _
    $region9: #{tpu_custom_call.1} parent=1 // pred_fallthru
      _
    // Predicated region
    $region10: #{tpu_custom_call.1} parent=1 // pred_check
      _
    $region11: #{tpu_custom_call.1} parent=1 // pred_check_branch
      %22 = sbr.rel (0) target = $region13
    $region12: #{tpu_custom_call.1} parent=1 // pred_region
      _
    $region13: #{tpu_custom_call.1} parent=1 // pred_fallthru
      _
    // Predicated region
    $region14: #{tpu_custom_call.1} parent=1 // pred_check
      _
    $region15: #{tpu_custom_call.1} parent=1 // pred_check_branch
      %24 = sbr.rel (0) target = $region17
    $region16: #{tpu_custom_call.1} parent=1 // pred_region
      _
    $region17: #{tpu_custom_call.1} parent=1 // pred_fallthru
      _
    // Predicated region
    $region18: #{tpu_custom_call.1} parent=1 // pred_check
      _
    $region19: #{tpu_custom_call.1} parent=1 // pred_check_branch
      %26 = sbr.rel (0) target = $region21
    $region20: #{tpu_custom_call.1} parent=1 // pred_region
      _
    $region21: #{tpu_custom_call.1} parent=1 // pred_fallthru
      _
    // Predicated region
    $region22: #{tpu_custom_call.1} parent=1 // pred_check
      _
    $region23: #{tpu_custom_call.1} parent=1 // pred_check_branch
      %28 = sbr.rel (0) target = $region25
    $region24: #{tpu_custom_call.1} parent=1 // pred_region
      _
    $region25: #{tpu_custom_call.1} parent=1 // pred_fallthru
      _
    // Predicated region
    $region26: #{tpu_custom_call.1} parent=1 // pred_check
      _
    $region27: #{tpu_custom_call.1} parent=1 // pred_check_branch
      %30 = sbr.rel (0) target = $region29
    $region28: #{tpu_custom_call.1} parent=1 // pred_region
      _
    $region29: #{tpu_custom_call.1} parent=1 // pred_fallthru
      _
    // Predicated region
    $region30: #{tpu_custom_call.1} parent=1 // pred_check
      _
    $region31: #{tpu_custom_call.1} parent=1 // pred_check_branch
      %32 = sbr.rel (0) target = $region33
    $region32: #{tpu_custom_call.1} parent=1 // pred_region
      _
    $region33: #{tpu_custom_call.1} parent=1 // pred_fallthru
      _
    // Predicated region
    $region34: #{tpu_custom_call.1} parent=1 // pred_check
      _
    $region35: #{tpu_custom_call.1} parent=1 // pred_check_branch
      %34 = sbr.rel (0) target = $region37
    $region36: #{tpu_custom_call.1} parent=1 // pred_region
      _
    $region37: #{tpu_custom_call.1} parent=1 // pred_fallthru
      _
    // Predicated region
    $region38: #{tpu_custom_call.1} parent=1 // pred_check
      _
    $region39: #{tpu_custom_call.1} parent=1 // pred_check_branch
      %36 = sbr.rel (0) target = $region41
    $region40: #{tpu_custom_call.1} parent=1 // pred_region
      _
    $region41: #{tpu_custom_call.1} parent=1 // pred_fallthru
      _
    // Predicated region
    $region42: #{tpu_custom_call.1} parent=1 // pred_check
      _
    $region43: #{tpu_custom_call.1} parent=1 // pred_check_branch
      %38 = sbr.rel (0) target = $region45
    $region44: #{tpu_custom_call.1} parent=1 // pred_region
      _
    $region45: #{tpu_custom_call.1} parent=1 // pred_fallthru
      _
    %v39 = vld [vmem:[%s0] sm:$0x1]
    %v40 = vld [vmem:[%s0 + $0x1] sm:$0x1]
    %v41 = vld [vmem:[%s3] sm:$0xff]
    %v42 = vld [vmem:[%s3 + $0x8] sm:$0xff]
    %v43 = vld [vmem:[%s3 + $0x10] sm:$0xff]
    %v44 = vld [vmem:[%s3 + $0x18] sm:$0xff]
    %v45 = vld [vmem:[%s4] sm:$0x1]
    %v47 = vlaneseq
    %v48 = vshrl.u32 %v47, 7
    %v49 = vsub.s32 0, %v48
    %v50 = vrot.slane %v45, %v49
    %v54 = vcombine.low %v39, %v40
    %v56 = vunpack.c.l.s4 1966171168
    %v57 = vunpack.c.0.s8 %v56
    %v58 = vlaneseq
    %v59 = vshrl.u32 %v58, 7
    %v60 = vsub.s32 %v57, %v59
    %v61 = vrot.slane %v54, %v60
    %v63 = vunpack.c.l.s4 1966171168
    %v64 = vunpack.c.0.s8 %v63
    %v65 = vlaneseq
    %v66 = vshrl.u32 %v65, 7
    %v67 = vsub.s32 %v64, %v66
    %v68 = vrot.slane %v61, %v67
    %vm69 = vcmask 261120
    %v70 = vsel %vm69, %v68, 0
    %72 = vmatprep.subr.mxu0 0.0
    %73 = vmatpush1.msra.mxu0 %v41
    %74 = vmatprep.subr.mxu0 0.0
    %75 = vmatpush1.msra.mxu0 %v42
    %76 = vmatprep.subr.mxu0 0.0
    %77 = vmatpush1.msra.mxu0 %v43
    %78 = vmatprep.subr.mxu0 0.0
    %79 = vmatpush1.msra.mxu0 %v44
    %80 = vmatprep.subr.mxu0 0.0
    %81 = vmatpush1.msra.mxu0 0.0
    %82 = vmatprep.subr.mxu0 0.0
    %83 = vmatpush1.msra.mxu0 0.0
    %84 = vmatprep.subr.mxu0 0.0
    %85 = vmatpush1.msra.mxu0 0.0
    %86 = vmatprep.subr.mxu0 0.0
    %87 = vmatpush1.msra.mxu0 0.0
    %88 = vmatprep.subr.mxu0 0.0
    %89 = vmatpush1.msra.mxu0 0.0
    %90 = vmatprep.subr.mxu0 0.0
    %91 = vmatpush1.msra.mxu0 0.0
    %92 = vmatprep.subr.mxu0 0.0
    %93 = vmatpush1.msra.mxu0 0.0
    %94 = vmatprep.subr.mxu0 0.0
    %95 = vmatpush1.msra.mxu0 0.0
    %96 = vmatprep.subr.mxu0 0.0
    %97 = vmatpush1.msra.mxu0 0.0
    %98 = vmatprep.subr.mxu0 0.0
    %99 = vmatpush1.msra.mxu0 0.0
    %100 = vmatprep.subr.mxu0 0.0
    %101 = vmatpush1.msra.mxu0 0.0
    %102 = vmatprep.subr.mxu0 0.0
    %103 = vmatpush1.msra.mxu0 0.0
    %104 = vmatprep.subr.mxu0 0.0
    %105 = vmatpush1.msra.mxu0 0.0
    %106 = vmatprep.subr.mxu0 0.0
    %107 = vmatpush1.msra.mxu0 0.0
    %108 = vmatprep.subr.mxu0 0.0
    %109 = vmatpush1.msra.mxu0 0.0
    %110 = vmatprep.subr.mxu0 0.0
    %111 = vmatpush1.msra.mxu0 0.0
    %112 = vmatprep.subr.mxu0 0.0
    %113 = vmatpush1.msra.mxu0 0.0
    %114 = vmatprep.subr.mxu0 0.0
    %115 = vmatpush1.msra.mxu0 0.0
    %116 = vmatprep.subr.mxu0 0.0
    %117 = vmatpush1.msra.mxu0 0.0
    %118 = vmatprep.subr.mxu0 0.0
    %119 = vmatpush1.msra.mxu0 0.0
    %120 = vmatprep.subr.mxu0 0.0
    %121 = vmatpush1.msra.mxu0 0.0
    %122 = vmatprep.subr.mxu0 0.0
    %123 = vmatpush1.msra.mxu0 0.0
    %124 = vmatprep.subr.mxu0 0.0
    %125 = vmatpush1.msra.mxu0 0.0
    %126 = vmatprep.subr.mxu0 0.0
    %127 = vmatpush1.msra.mxu0 0.0
    %128 = vmatprep.subr.mxu0 0.0
    %129 = vmatpush1.msra.mxu0 0.0
    %130 = vmatprep.subr.mxu0 0.0
    %131 = vmatpush1.msra.mxu0 0.0
    %132 = vmatprep.subr.mxu0 0.0
    %133 = vmatpush1.msra.mxu0 0.0
    %134 = vmatprep.subr.mxu0 0.0
    %135 = vmatpush1.msra.mxu0 0.0
    %136 = vmatprep.mubr.f32.mxu0 0.0
    %137 = vmatmul.mubr.f32.gmra.mrb[0].mxu0 %v70
    %v138 = vpop.f32.mrb[0].mxu0
    %v139 = vadd.f32 %v50, %v138
    %v140 = vpop.f32.mrb[0].mxu0
    %141 = vdwg.mxu0
    %v142 = vmax.f32 %v139, 0.0
    %v143 = vld [vmem:[%s5] sm:$0xff]
    %v144 = vld [vmem:[%s5 + $0x8] sm:$0xff]
    %v145 = vld [vmem:[%s5 + $0x10] sm:$0xff]
    %v146 = vld [vmem:[%s5 + $0x18] sm:$0xff]
    %v147 = vld [vmem:[%s6] sm:$0x1]
    %v149 = vlaneseq
    %v150 = vshrl.u32 %v149, 7
    %v151 = vsub.s32 0, %v150
    %v152 = vrot.slane %v147, %v151
    %v155 = vsel %vm69, %v142, 0
    %157 = vmatprep.subr.mxu0 0.0
    %158 = vmatpush1.msra.mxu0 %v143
    %159 = vmatprep.subr.mxu0 0.0
    %160 = vmatpush1.msra.mxu0 %v144
    %161 = vmatprep.subr.mxu0 0.0
    %162 = vmatpush1.msra.mxu0 %v145
    %163 = vmatprep.subr.mxu0 0.0
    %164 = vmatpush1.msra.mxu0 %v146
    %165 = vmatprep.subr.mxu0 0.0
    %166 = vmatpush1.msra.mxu0 0.0
    %167 = vmatprep.subr.mxu0 0.0
    %168 = vmatpush1.msra.mxu0 0.0
    %169 = vmatprep.subr.mxu0 0.0
    %170 = vmatpush1.msra.mxu0 0.0
    %171 = vmatprep.subr.mxu0 0.0
    %172 = vmatpush1.msra.mxu0 0.0
    %173 = vmatprep.subr.mxu0 0.0
    %174 = vmatpush1.msra.mxu0 0.0
    %175 = vmatprep.subr.mxu0 0.0
    %176 = vmatpush1.msra.mxu0 0.0
    %177 = vmatprep.subr.mxu0 0.0
    %178 = vmatpush1.msra.mxu0 0.0
    %179 = vmatprep.subr.mxu0 0.0
    %180 = vmatpush1.msra.mxu0 0.0
    %181 = vmatprep.subr.mxu0 0.0
    %182 = vmatpush1.msra.mxu0 0.0
    %183 = vmatprep.subr.mxu0 0.0
    %184 = vmatpush1.msra.mxu0 0.0
    %185 = vmatprep.subr.mxu0 0.0
    %186 = vmatpush1.msra.mxu0 0.0
    %187 = vmatprep.subr.mxu0 0.0
    %188 = vmatpush1.msra.mxu0 0.0
    %189 = vmatprep.subr.mxu0 0.0
    %190 = vmatpush1.msra.mxu0 0.0
    %191 = vmatprep.subr.mxu0 0.0
    %192 = vmatpush1.msra.mxu0 0.0
    %193 = vmatprep.subr.mxu0 0.0
    %194 = vmatpush1.msra.mxu0 0.0
    %195 = vmatprep.subr.mxu0 0.0
    %196 = vmatpush1.msra.mxu0 0.0
    %197 = vmatprep.subr.mxu0 0.0
    %198 = vmatpush1.msra.mxu0 0.0
    %199 = vmatprep.subr.mxu0 0.0
    %200 = vmatpush1.msra.mxu0 0.0
    %201 = vmatprep.subr.mxu0 0.0
    %202 = vmatpush1.msra.mxu0 0.0
    %203 = vmatprep.subr.mxu0 0.0
    %204 = vmatpush1.msra.mxu0 0.0
    %205 = vmatprep.subr.mxu0 0.0
    %206 = vmatpush1.msra.mxu0 0.0
    %207 = vmatprep.subr.mxu0 0.0
    %208 = vmatpush1.msra.mxu0 0.0
    %209 = vmatprep.subr.mxu0 0.0
    %210 = vmatpush1.msra.mxu0 0.0
    %211 = vmatprep.subr.mxu0 0.0
    %212 = vmatpush1.msra.mxu0 0.0
    %213 = vmatprep.subr.mxu0 0.0
    %214 = vmatpush1.msra.mxu0 0.0
    %215 = vmatprep.subr.mxu0 0.0
    %216 = vmatpush1.msra.mxu0 0.0
    %217 = vmatprep.subr.mxu0 0.0
    %218 = vmatpush1.msra.mxu0 0.0
    %219 = vmatprep.subr.mxu0 0.0
    %220 = vmatpush1.msra.mxu0 0.0
    %221 = vmatprep.mubr.f32.mxu0 0.0
    %222 = vmatmul.mubr.f32.gmra.mrb[0].mxu0 %v155
    %v223 = vpop.f32.mrb[0].mxu0
    %v224 = vadd.f32 %v152, %v223
    %v225 = vpop.f32.mrb[0].mxu0
    %226 = vdwg.mxu0
    %v227 = vld [vmem:[%s1] sm:$0xff]
    %v228 = vld [vmem:[%s1 + $0x8] sm:$0xff]
    %v229 = vld [vmem:[%s2] sm:$0xff]
    %v230 = vld [vmem:[%s2 + $0x8] sm:$0xff]
    %v231 = vadd.f32 %v227, %v229
    %v232 = vadd.f32 %v228, %v230
    %v234 = vsel %vm69, %v231, 0
    %v237 = vsel %vm69, %v232, 0
    %239 = vmatprep.subr.mxu0 0.0
    %240 = vmatpush1.msra.mxu0 %v143
    %241 = vmatprep.subr.mxu0 0.0
    %242 = vmatpush1.msra.mxu0 %v144
    %243 = vmatprep.subr.mxu0 0.0
    %244 = vmatpush1.msra.mxu0 %v145
    %245 = vmatprep.subr.mxu0 0.0
    %246 = vmatpush1.msra.mxu0 %v146
    %247 = vmatprep.subr.mxu0 0.0
    %248 = vmatpush1.msra.mxu0 0.0
    %249 = vmatprep.subr.mxu0 0.0
    %250 = vmatpush1.msra.mxu0 0.0
    %251 = vmatprep.subr.mxu0 0.0
    %252 = vmatpush1.msra.mxu0 0.0
    %253 = vmatprep.subr.mxu0 0.0
    %254 = vmatpush1.msra.mxu0 0.0
    %255 = vmatprep.subr.mxu0 0.0
    %256 = vmatpush1.msra.mxu0 0.0
    %257 = vmatprep.subr.mxu0 0.0
    %258 = vmatpush1.msra.mxu0 0.0
    %259 = vmatprep.subr.mxu0 0.0
    %260 = vmatpush1.msra.mxu0 0.0
    %261 = vmatprep.subr.mxu0 0.0
    %262 = vmatpush1.msra.mxu0 0.0
    %263 = vmatprep.subr.mxu0 0.0
    %264 = vmatpush1.msra.mxu0 0.0
    %265 = vmatprep.subr.mxu0 0.0
    %266 = vmatpush1.msra.mxu0 0.0
    %267 = vmatprep.subr.mxu0 0.0
    %268 = vmatpush1.msra.mxu0 0.0
    %269 = vmatprep.subr.mxu0 0.0
    %270 = vmatpush1.msra.mxu0 0.0
    %271 = vmatprep.subr.mxu0 0.0
    %272 = vmatpush1.msra.mxu0 0.0
    %273 = vmatprep.subr.mxu0 0.0
    %274 = vmatpush1.msra.mxu0 0.0
    %275 = vmatprep.subr.mxu0 0.0
    %276 = vmatpush1.msra.mxu0 0.0
    %277 = vmatprep.subr.mxu0 0.0
    %278 = vmatpush1.msra.mxu0 0.0
    %279 = vmatprep.subr.mxu0 0.0
    %280 = vmatpush1.msra.mxu0 0.0
    %281 = vmatprep.subr.mxu0 0.0
    %282 = vmatpush1.msra.mxu0 0.0
    %283 = vmatprep.subr.mxu0 0.0
    %284 = vmatpush1.msra.mxu0 0.0
    %285 = vmatprep.subr.mxu0 0.0
    %286 = vmatpush1.msra.mxu0 0.0
    %287 = vmatprep.subr.mxu0 0.0
    %288 = vmatpush1.msra.mxu0 0.0
    %289 = vmatprep.subr.mxu0 0.0
    %290 = vmatpush1.msra.mxu0 0.0
    %291 = vmatprep.subr.mxu0 0.0
    %292 = vmatpush1.msra.mxu0 0.0
    %293 = vmatprep.subr.mxu0 0.0
    %294 = vmatpush1.msra.mxu0 0.0
    %295 = vmatprep.subr.mxu0 0.0
    %296 = vmatpush1.msra.mxu0 0.0
    %297 = vmatprep.subr.mxu0 0.0
    %298 = vmatpush1.msra.mxu0 0.0
    %299 = vmatprep.subr.mxu0 0.0
    %300 = vmatpush1.msra.mxu0 0.0
    %301 = vmatprep.subr.mxu0 0.0
    %302 = vmatpush1.msra.mxu0 0.0
    %303 = vmatprep.mubr.f32.mxu0 0.0
    %304 = vmatmul.mubr.f32.gmra.mrb[0].mxu0 %v234
    %v305 = vpop.f32.mrb[0].mxu0
    %v306 = vadd.f32 0.0, %v305
    %v307 = vpop.f32.mrb[0].mxu0
    %308 = vmatprep.mubr.f32.mxu0 0.0
    %309 = vmatmul.mubr.f32.gmra.mrb[0].mxu0 %v237
    %v310 = vpop.f32.mrb[0].mxu0
    %v311 = vadd.f32 0.0, %v310
    %v312 = vpop.f32.mrb[0].mxu0
    %313 = vdwg.mxu0
    %v316 = vunpack.c.l.s4 1966171168
    %v317 = vunpack.c.0.s8 %v316
    %v318 = vlaneseq
    %v319 = vshrl.u32 %v318, 7
    %v320 = vsub.s32 %v317, %v319
    %v321 = vrot.slane %v224, %v320
    %v322 = vcombine.high %v321, %v321
    %v324 = vunpack.c.l.s4 1966171168
    %v325 = vunpack.c.0.s8 %v324
    %v326 = vlaneseq
    %v327 = vshrl.u32 %v326, 7
    %v328 = vsub.s32 %v325, %v327
    %v329 = vrot.slane %v321, %v328
    %v331 = vunpack.c.l.s4 1966171168
    %v332 = vunpack.c.0.s8 %v331
    %v333 = vlaneseq
    %v334 = vshrl.u32 %v333, 7
    %v335 = vsub.s32 %v332, %v334
    %v336 = vrot.slane %v322, %v335
    %v337 = vlaneseq
    %v338 = vshrl.u32 %v337, 7
    %v339 = vsub.s32 0, %v338
    %v340 = vrot.slane %v329, %v339
    %v341 = vlaneseq
    %v342 = vshrl.u32 %v341, 7
    %v343 = vsub.s32 0, %v342
    %v344 = vrot.slane %v336, %v343
    %v347 = vadd.f32 %v306, %v340
    %v348 = vadd.f32 %v311, %v344
    %v349 = vmax.f32 %v347, 0.0
    %v350 = vmax.f32 %v348, 0.0
    %v351 = vld [vmem:[%s7] sm:$0xff]
    %v352 = vld [vmem:[%s7 + $0x8] sm:$0xff]
    %v353 = vld [vmem:[%s7 + $0x10] sm:$0xff]
    %v354 = vld [vmem:[%s7 + $0x18] sm:$0xff]
    %v355 = vld [vmem:[%s7 + $0x20] sm:$0xff]
    %v356 = vld [vmem:[%s7 + $0x28] sm:$0xff]
    %v357 = vld [vmem:[%s7 + $0x30] sm:$0xff]
    %v358 = vld [vmem:[%s7 + $0x38] sm:$0xff]
    %v359 = vld [vmem:[%s8] sm:$0x1]
    %v361 = vlaneseq
    %v362 = vshrl.u32 %v361, 7
    %v363 = vsub.s32 0, %v362
    %v364 = vrot.slane %v359, %v363
    %vm366 = vcmask 523264
    %v368 = vsel %vm366, %v349, 0
    %v371 = vsel %vm366, %v350, 0
    %373 = vmatprep.subr.mxu0 0.0
    %374 = vmatpush1.msra.mxu0 %v351
    %375 = vmatprep.subr.mxu0 0.0
    %376 = vmatpush1.msra.mxu0 %v352
    %377 = vmatprep.subr.mxu0 0.0
    %378 = vmatpush1.msra.mxu0 %v353
    %379 = vmatprep.subr.mxu0 0.0
    %380 = vmatpush1.msra.mxu0 %v354
    %381 = vmatprep.subr.mxu0 0.0
    %382 = vmatpush1.msra.mxu0 %v355
    %383 = vmatprep.subr.mxu0 0.0
    %384 = vmatpush1.msra.mxu0 %v356
    %385 = vmatprep.subr.mxu0 0.0
    %386 = vmatpush1.msra.mxu0 %v357
    %387 = vmatprep.subr.mxu0 0.0
    %388 = vmatpush1.msra.mxu0 %v358
    %389 = vmatprep.subr.mxu0 0.0
    %390 = vmatpush1.msra.mxu0 0.0
    %391 = vmatprep.subr.mxu0 0.0
    %392 = vmatpush1.msra.mxu0 0.0
    %393 = vmatprep.subr.mxu0 0.0
    %394 = vmatpush1.msra.mxu0 0.0
    %395 = vmatprep.subr.mxu0 0.0
    %396 = vmatpush1.msra.mxu0 0.0
    %397 = vmatprep.subr.mxu0 0.0
    %398 = vmatpush1.msra.mxu0 0.0
    %399 = vmatprep.subr.mxu0 0.0
    %400 = vmatpush1.msra.mxu0 0.0
    %401 = vmatprep.subr.mxu0 0.0
    %402 = vmatpush1.msra.mxu0 0.0
    %403 = vmatprep.subr.mxu0 0.0
    %404 = vmatpush1.msra.mxu0 0.0
    %405 = vmatprep.subr.mxu0 0.0
    %406 = vmatpush1.msra.mxu0 0.0
    %407 = vmatprep.subr.mxu0 0.0
    %408 = vmatpush1.msra.mxu0 0.0
    %409 = vmatprep.subr.mxu0 0.0
    %410 = vmatpush1.msra.mxu0 0.0
    %411 = vmatprep.subr.mxu0 0.0
    %412 = vmatpush1.msra.mxu0 0.0
    %413 = vmatprep.subr.mxu0 0.0
    %414 = vmatpush1.msra.mxu0 0.0
    %415 = vmatprep.subr.mxu0 0.0
    %416 = vmatpush1.msra.mxu0 0.0
    %417 = vmatprep.subr.mxu0 0.0
    %418 = vmatpush1.msra.mxu0 0.0
    %419 = vmatprep.subr.mxu0 0.0
    %420 = vmatpush1.msra.mxu0 0.0
    %421 = vmatprep.subr.mxu0 0.0
    %422 = vmatpush1.msra.mxu0 0.0
    %423 = vmatprep.subr.mxu0 0.0
    %424 = vmatpush1.msra.mxu0 0.0
    %425 = vmatprep.subr.mxu0 0.0
    %426 = vmatpush1.msra.mxu0 0.0
    %427 = vmatprep.subr.mxu0 0.0
    %428 = vmatpush1.msra.mxu0 0.0
    %429 = vmatprep.subr.mxu0 0.0
    %430 = vmatpush1.msra.mxu0 0.0
    %431 = vmatprep.subr.mxu0 0.0
    %432 = vmatpush1.msra.mxu0 0.0
    %433 = vmatprep.subr.mxu0 0.0
    %434 = vmatpush1.msra.mxu0 0.0
    %435 = vmatprep.subr.mxu0 0.0
    %436 = vmatpush1.msra.mxu0 0.0
    %437 = vmatprep.mubr.f32.mxu0 0.0
    %438 = vmatmul.mubr.f32.gmra.mrb[0].mxu0 %v368
    %v439 = vpop.f32.mrb[0].mxu0
    %v440 = vadd.f32 %v364, %v439
    %v441 = vpop.f32.mrb[0].mxu0
    %442 = vmatprep.mubr.f32.mxu0 0.0
    %443 = vmatmul.mubr.f32.gmra.mrb[0].mxu0 %v371
    %v444 = vpop.f32.mrb[0].mxu0
    %v445 = vadd.f32 %v364, %v444
    %v446 = vpop.f32.mrb[0].mxu0
    %447 = vdwg.mxu0
    %v448 = vmax.f32 %v440, 0.0
    %v449 = vmax.f32 %v445, 0.0
    %v450 = vld [vmem:[%s9] sm:$0xff]
    %v451 = vld [vmem:[%s9 + $0x8] sm:$0xff]
    %v452 = vld [vmem:[%s9 + $0x10] sm:$0xff]
    %v453 = vld [vmem:[%s9 + $0x18] sm:$0xff]
    %v454 = vld [vmem:[%s10] sm:$0x1]
    %v456 = vlaneseq
    %v457 = vshrl.u32 %v456, 7
    %v458 = vsub.s32 0, %v457
    %v459 = vrot.slane %v454, %v458
    %v462 = vsel %vm69, %v448, 0
    %v465 = vsel %vm69, %v449, 0
    %467 = vmatprep.subr.mxu0 0.0
    %468 = vmatpush1.msra.mxu0 %v450
    %469 = vmatprep.subr.mxu0 0.0
    %470 = vmatpush1.msra.mxu0 %v451
    %471 = vmatprep.subr.mxu0 0.0
    %472 = vmatpush1.msra.mxu0 %v452
    %473 = vmatprep.subr.mxu0 0.0
    %474 = vmatpush1.msra.mxu0 %v453
    %475 = vmatprep.subr.mxu0 0.0
    %476 = vmatpush1.msra.mxu0 0.0
    %477 = vmatprep.subr.mxu0 0.0
    %478 = vmatpush1.msra.mxu0 0.0
    %479 = vmatprep.subr.mxu0 0.0
    %480 = vmatpush1.msra.mxu0 0.0
    %481 = vmatprep.subr.mxu0 0.0
    %482 = vmatpush1.msra.mxu0 0.0
    %483 = vmatprep.subr.mxu0 0.0
    %484 = vmatpush1.msra.mxu0 0.0
    %485 = vmatprep.subr.mxu0 0.0
    %486 = vmatpush1.msra.mxu0 0.0
    %487 = vmatprep.subr.mxu0 0.0
    %488 = vmatpush1.msra.mxu0 0.0
    %489 = vmatprep.subr.mxu0 0.0
    %490 = vmatpush1.msra.mxu0 0.0
    %491 = vmatprep.subr.mxu0 0.0
    %492 = vmatpush1.msra.mxu0 0.0
    %493 = vmatprep.subr.mxu0 0.0
    %494 = vmatpush1.msra.mxu0 0.0
    %495 = vmatprep.subr.mxu0 0.0
    %496 = vmatpush1.msra.mxu0 0.0
    %497 = vmatprep.subr.mxu0 0.0
    %498 = vmatpush1.msra.mxu0 0.0
    %499 = vmatprep.subr.mxu0 0.0
    %500 = vmatpush1.msra.mxu0 0.0
    %501 = vmatprep.subr.mxu0 0.0
    %502 = vmatpush1.msra.mxu0 0.0
    %503 = vmatprep.subr.mxu0 0.0
    %504 = vmatpush1.msra.mxu0 0.0
    %505 = vmatprep.subr.mxu0 0.0
    %506 = vmatpush1.msra.mxu0 0.0
    %507 = vmatprep.subr.mxu0 0.0
    %508 = vmatpush1.msra.mxu0 0.0
    %509 = vmatprep.subr.mxu0 0.0
    %510 = vmatpush1.msra.mxu0 0.0
    %511 = vmatprep.subr.mxu0 0.0
    %512 = vmatpush1.msra.mxu0 0.0
    %513 = vmatprep.subr.mxu0 0.0
    %514 = vmatpush1.msra.mxu0 0.0
    %515 = vmatprep.subr.mxu0 0.0
    %516 = vmatpush1.msra.mxu0 0.0
    %517 = vmatprep.subr.mxu0 0.0
    %518 = vmatpush1.msra.mxu0 0.0
    %519 = vmatprep.subr.mxu0 0.0
    %520 = vmatpush1.msra.mxu0 0.0
    %521 = vmatprep.subr.mxu0 0.0
    %522 = vmatpush1.msra.mxu0 0.0
    %523 = vmatprep.subr.mxu0 0.0
    %524 = vmatpush1.msra.mxu0 0.0
    %525 = vmatprep.subr.mxu0 0.0
    %526 = vmatpush1.msra.mxu0 0.0
    %527 = vmatprep.subr.mxu0 0.0
    %528 = vmatpush1.msra.mxu0 0.0
    %529 = vmatprep.subr.mxu0 0.0
    %530 = vmatpush1.msra.mxu0 0.0
    %531 = vmatprep.mubr.f32.mxu0 0.0
    %532 = vmatmul.mubr.f32.gmra.mrb[0].mxu0 %v462
    %v533 = vpop.f32.mrb[0].mxu0
    %v534 = vadd.f32 %v459, %v533
    %v535 = vpop.f32.mrb[0].mxu0
    %536 = vmatprep.mubr.f32.mxu0 0.0
    %537 = vmatmul.mubr.f32.gmra.mrb[0].mxu0 %v465
    %v538 = vpop.f32.mrb[0].mxu0
    %v539 = vadd.f32 %v459, %v538
    %v540 = vpop.f32.mrb[0].mxu0
    %541 = vdwg.mxu0
    %vm542 = vcmask 130048
    %543 = vst.msk [vmem:[#allocation2] sm:$0xff] %vm542, %v534
    %544 = vst.msk [vmem:[#allocation2 + $0x8] sm:$0xff] %vm542, %v539
    // Predicated region
    $region46: #{tpu_custom_call.1} parent=1 // pred_check
      _
    $region47: #{tpu_custom_call.1} parent=1 // pred_check_branch
      %546 = sbr.rel (0) target = $region49
    $region48: #{tpu_custom_call.1} parent=1 // pred_region
      %s548 = ssub.s32 256, 256
      %549 = vsyncadd [#allocation3], %s548
      %s550 = sshll.u32 [#allocation2], 4
      %s551 = int_to_ptr.vmem [resolvable:$true] %s550
      %556 = dma.vmem_to_hbm [thread:$0]  %s551, 256, %s11, [#allocation3], 128, 128, 8
    $region49: #{tpu_custom_call.1} parent=1 // pred_fallthru
      _
    // Predicated region
    $region50: #{tpu_custom_call.1} parent=1 // pred_check
      _
    $region51: #{tpu_custom_call.1} parent=1 // pred_check_branch
      %558 = sbr.rel (0) target = $region53
    $region52: #{tpu_custom_call.1} parent=1 // pred_region
      %559 = dma.done [#allocation3], 256
    $region53: #{tpu_custom_call.1} parent=1 // pred_fallthru
      _
    %560 = vsyncpa [#allocation3], 1

</llo_original>
